<compile_context>
chip_gen: v7x
topology: tpu7x:2x2x1
jax: 0.10.0
libtpu: 0.0.40
codegen_flags: <defaults>
</compile_context>

<pallas_src>
import functools

import jax
import jax.numpy as jnp
from jax import lax
from jax.experimental import pallas as pl
from jax.experimental.pallas import tpu as pltpu

DIM = 64   # matches EncodingLoss(dim=64)
P = 0.99   # matches EncodingLoss(p=0.99)


def _round_up(x, m):
    return ((x + m - 1) // m) * m


# ---------------------------------------------------------------------------
# Kernel 1: batched reduction_loss over a stack [B, N_pad, D] -> [B]
# ---------------------------------------------------------------------------
def _reduction_kernel(x_ref, mean_ref, out_ref,
                      xtx_ref, sabs_ref, sabsc_ref, *, n_rows, n_pad_rows):
    nb = pl.program_id(1)

    @pl.when(nb == 0)
    def _():
        xtx_ref[...] = jnp.zeros_like(xtx_ref)
        sabs_ref[...] = jnp.zeros_like(sabs_ref)
        sabsc_ref[...] = jnp.zeros_like(sabsc_ref)

    x = x_ref[...].astype(jnp.float32)              # (tile_n, D), per-tile cast
    mean = mean_ref[...]                            # (1, D) f32 global column mean
    xc = x - mean                                   # pad rows hold the mean -> xc == 0

    # Xc^T Xc on the MXU.
    xtx_ref[...] += lax.dot_general(xc, xc, (((0,), (0,)), ((), ())),
                                    preferred_element_type=jnp.float32)
    # Column sums of |x| / |xc| as ones-row matmuls: moves the cross-sublane
    # reductions off the VPU/XLU onto the MXU, which has large slack at D=64.
    ones = jnp.ones((8, x.shape[0]), jnp.float32)
    sabs_ref[...] += lax.dot_general(ones, jnp.abs(x), (((1,), (0,)), ((), ())),
                                     preferred_element_type=jnp.float32)
    sabsc_ref[...] += lax.dot_general(ones, jnp.abs(xc), (((1,), (0,)), ((), ())),
                                      preferred_element_type=jnp.float32)

    @pl.when(nb == pl.num_programs(1) - 1)
    def _():
        d = xtx_ref.shape[0]
        denom = jnp.float32(n_rows - 1)
        xtx = xtx_ref[...]
        # trace(Xc^T Xc) straight from the accumulated matmul (finalize only).
        eye = (lax.broadcasted_iota(jnp.int32, xtx.shape, 0) ==
               lax.broadcasted_iota(jnp.int32, xtx.shape, 1))
        trace_cov = jnp.sum(jnp.where(eye, xtx, 0.0)) / denom
        sum_abs_cov = jnp.sum(jnp.abs(xtx)) / denom
        # cov symmetric with non-negative diagonal ->
        #   sum(strict upper |cov|) = (sum|cov| - trace) / 2; torch.mean over
        #   triu divides by the FULL d*d element count.
        loss_cor = (sum_abs_cov - trace_cov) * 0.5 / (d * d)

        # All 8 rows of each ones-matmul result are identical -> /8 is exact.
        sum_abs_xc = jnp.sum(sabsc_ref[...]) / 8.0
        # Pad rows contain the column mean; subtract their |x| contribution.
        sum_abs_x = (jnp.sum(sabs_ref[...]) / 8.0
                     - jnp.float32(n_pad_rows) * jnp.sum(jnp.abs(mean)))

        nd = jnp.float32(n_rows * d)
        loss_var = nd / sum_abs_xc                  # 1 / mean|x - colmean(x)|
        loss_l1 = sum_abs_x / nd                    # mean|x|
        total = loss_cor + loss_var + loss_l1
        out_ref[...] = jnp.full(out_ref.shape, total, dtype=out_ref.dtype)


def reduction_losses_pallas(x, *, max_tile_n=2048):
    """x: [B, N, D] stack of same-shaped embeddings -> [B] reduction losses."""
    b, n, d = x.shape
    # Exact column means, accumulated in f32 (no f32 copy of x is materialized;
    # bf16 inputs stream at half the HBM bytes in both passes).
    means = jnp.mean(x, axis=1, keepdims=True, dtype=jnp.float32)      # [B, 1, D] f32

    # Padded cdiv grid: never fall back to a single full-N block.
    tile_n = min(max_tile_n, _round_up(n, 8))
    n_pad = _round_up(n, tile_n)
    n_pad_rows = n_pad - n
    if n_pad_rows:
        # Pad rows with the column mean -> zero contribution to Xc^T Xc and sum|xc|;
        # their |x| contribution is subtracted in the kernel finalize.  (For low-
        # precision input dtypes the cast of the mean introduces a tiny, bounded
        # error only on the few pad rows.)
        pad = jnp.broadcast_to(means, (b, n_pad_rows, d)).astype(x.dtype)
        x = jnp.concatenate([x, pad], axis=1)
    num_n = n_pad // tile_n

    # TODO(synk): on v7x (2 TCs) a B==1 group leaves one TensorCore idle; a size-2
    # parallel split of the N axis with two partial accumulators would recover it.
    out = pl.pallas_call(
        functools.partial(_reduction_kernel, n_rows=n, n_pad_rows=n_pad_rows),
        out_shape=jax.ShapeDtypeStruct((b, 8, 128), jnp.float32),      # lane-dense slab
        grid_spec=pltpu.PrefetchScalarGridSpec(
            num_scalar_prefetch=0,
            grid=(b, num_n),                                           # reduction axis last
            in_specs=[pl.BlockSpec((None, tile_n, d), lambda bb, nn: (bb, nn, 0)),
                      pl.BlockSpec((None, 1, d), lambda bb, nn: (bb, 0, 0))],
            out_specs=pl.BlockSpec((None, 8, 128), lambda bb, nn: (bb, 0, 0)),
            scratch_shapes=[pltpu.VMEM((d, d), jnp.float32),
                            pltpu.VMEM((8, d), jnp.float32),
                            pltpu.VMEM((8, d), jnp.float32)]),
        compiler_params=pltpu.CompilerParams(
            dimension_semantics=("parallel", "arbitrary"),
            vmem_limit_bytes=32 * 1024 * 1024),
    )(x, means)
    return out[:, 0, 0]


def _grouped_reduction_losses(embeddings):
    """One batched pallas_call per group of identically-shaped embeddings."""
    groups = {}
    for idx, e in enumerate(embeddings):
        groups.setdefault(tuple(e.shape), []).append(idx)
    losses = [None] * len(embeddings)
    for _, idxs in groups.items():
        stacked = jnp.stack([embeddings[i] for i in idxs], axis=0)
        vals = reduction_losses_pallas(stacked)
        for j, i in enumerate(idxs):
            losses[i] = vals[j]
    return losses


# ---------------------------------------------------------------------------
# Kernel 2: tiled row-wise max of (a_i . r_n_j) against pre-normalized r,
#           with the r block sub-chunked so the sim tile never materializes whole.
# ---------------------------------------------------------------------------
def _cosine_rowmax_kernel(a_ref, r_ref, out_ref, acc_ref, *, chunk_m):
    m = pl.program_id(1)

    @pl.when(m == 0)
    def _():
        acc_ref[...] = jnp.full_like(acc_ref, -jnp.inf)

    a = a_ref[...]                                    # (tile_na, D), compute dtype
    num_chunks = r_ref.shape[0] // chunk_m

    def body(c, cur):
        off = pl.multiple_of(c * chunk_m, chunk_m)
        r = r_ref[pl.ds(off, chunk_m), :]             # (chunk_m, D) pre-normalized rows
        # sim^T = r @ a^T -> (chunk_m, tile_na); sublane-axis max keeps the running
        # max lane-major (1, tile_na).  Sub-chunking bounds the VMEM intermediate and
        # overlaps MXU with the max reduction.
        sim_t = lax.dot_general(r, a, (((1,), (1,)), ((), ())),
                                preferred_element_type=jnp.float32)
        return jnp.maximum(cur, jnp.max(sim_t, axis=0, keepdims=True))

    acc_ref[...] = lax.fori_loop(0, num_chunks, body, acc_ref[...], unroll=True)

    @pl.when(m == pl.num_programs(1) - 1)
    def _():
        # Lane-dense (8, tile_na) slab; the per-row 1/||a_i|| scaling (which commutes
        # with max_j) is applied once in f32 outside the kernel.
        out_ref[...] = jnp.broadcast_to(acc_ref[...], out_ref.shape)


def cosine_rowmax_pallas(a, r_normalized, *, tile_na=1024, tile_m=4096,
                         chunk_m=512, compute_dtype=jnp.float32):
    """max_j cos(a_i, r_j) for every row of a, with r rows already L2-normalized."""
    na, d = a.shape
    m = r_normalized.shape[0]

    # Row norms of `a` in f32 from the ORIGINAL values (numerically safe even when
    # `a` is streamed through the kernel in bf16).
    a32 = a.astype(jnp.float32)
    inv_norm = lax.rsqrt(jnp.sum(a32 * a32, axis=1))                   # (na,) f32

    tile_na = min(tile_na, _round_up(na, 8))
    if m <= chunk_m:
        tile_m = _round_up(m, 8)
        chunk_m = tile_m
    else:
        tile_m = min(tile_m, _round_up(m, chunk_m))    # multiple of chunk_m
    na_pad = _round_up(na, tile_na)
    m_pad = _round_up(m, tile_m)

    a_c = a.astype(compute_dtype)                      # stream `a` in compute dtype
    if na_pad != na:
        # pad rows' outputs are discarded after the call; zeros are fine here.
        a_c = jnp.concatenate([a_c, jnp.zeros((na_pad - na, d), compute_dtype)], axis=0)
    r = r_normalized.astype(compute_dtype)
    if m_pad != m:
        # duplicate an existing normalized row: duplicates can never change the max.
        r = jnp.concatenate([r, jnp.broadcast_to(r[:1], (m_pad - m, d))], axis=0)

    gi, gm = na_pad // tile_na, m_pad // tile_m
    # Working set (f32, tile_na=1024 / tile_m=4096 / chunk 512): ~4.6 MiB — fits the
    # scoped default on every generation incl. v7x; the limit below leaves headroom
    # for raising tile_m to 8192 on v5e/v6e while staying < v7x's 64 MiB physical.
    out = pl.pallas_call(
        functools.partial(_cosine_rowmax_kernel, chunk_m=chunk_m),
        out_shape=jax.ShapeDtypeStruct((gi, 8, tile_na), jnp.float32),
        grid_spec=pltpu.PrefetchScalarGridSpec(
            num_scalar_prefetch=0,
            grid=(gi, gm),                                   # reduction (M) axis last
            in_specs=[pl.BlockSpec((tile_na, d), lambda i, mm: (i, 0)),
                      pl.BlockSpec((tile_m, d), lambda i, mm: (mm, 0))],
            out_specs=pl.BlockSpec((None, 8, tile_na), lambda i, mm: (i, 0, 0)),
            scratch_shapes=[pltpu.VMEM((1, tile_na), jnp.float32)]),
        compiler_params=pltpu.CompilerParams(
            dimension_semantics=("parallel", "arbitrary"),
            vmem_limit_bytes=48 * 1024 * 1024),
    )(a_c, r)
    row_max = out[:, 0, :].reshape(-1)[:na]
    return row_max * inv_norm


# ---------------------------------------------------------------------------
# Glue: top-k mean via the small tail, and the full forward pass
# ---------------------------------------------------------------------------
def _topk_mean(v, k):
    n = v.shape[0]
    k = max(int(k), 1)   # guard degenerate na<=1 (reference would produce NaN)
    if k >= n:
        return jnp.mean(v)
    # mean(top-k) = (sum(all) - sum of the (n-k) smallest) / k; selecting the ~1%
    # tail avoids a near-full sort when k ~= 0.99 * n.
    tail = lax.top_k(-v, n - k)[0]
    return (jnp.sum(v) + jnp.sum(tail)) / k


def encoding_loss(atac_embeddings, rna_embeddings, dim=DIM, p=P,
                  cosine_compute_dtype=jnp.bfloat16):
    # --- reduction losses (batched per same-shape group) ---
    rna_losses = _grouped_reduction_losses(rna_embeddings)
    atac_losses = _grouped_reduction_losses(atac_embeddings)
    rna_red = sum(rna_losses) / len(rna_embeddings)
    atac_red = sum(atac_losses) / len(atac_embeddings)

    # --- cosine similarity: one fused call over the concatenated atac rows ---
    rna_cat = jnp.concatenate(rna_embeddings, axis=0).astype(jnp.float32)
    r_n = rna_cat * lax.rsqrt(jnp.sum(rna_cat * rna_cat, axis=1, keepdims=True))
    a_cat = jnp.concatenate(atac_embeddings, axis=0)
    row_max = cosine_rowmax_pallas(a_cat, r_n, compute_dtype=cosine_compute_dtype)

    sim_loss = 0.0
    off = 0
    for a in atac_embeddings:
        na = a.shape[0]
        k = int(na * p)                                   # torch.topk(..., int(Na*p))
        sim_loss = sim_loss + _topk_mean(row_max[off:off + na], k)
        off += na
    sim_loss = sim_loss / len(atac_embeddings)
    # cosine_him == cosine_sim (both L2 row normalization) => him_loss == sim_loss.
    him_loss = sim_loss

    # TODO(synk): the reference also computes an RBF-MMD loss on the concatenated
    # embeddings, but it is never added to the returned loss (dead code) — omitted.

    return rna_red + atac_red - (him_loss + sim_loss) / 2.0


# ---------------------------------------------------------------------------
# Pure-JAX reference (mirrors the PyTorch math) for a correctness check
# ---------------------------------------------------------------------------
def _reference_loss(atac_embeddings, rna_embeddings, dim=DIM, p=P):
    def red(x):
        n, d = x.shape
        xc = x - jnp.mean(x, axis=0, keepdims=True)
        cov = (xc.T @ xc) / (n - 1)
        l = jnp.mean(jnp.abs(jnp.triu(cov, 1)))
        l = l + 1.0 / jnp.mean(jnp.abs(xc))
        l = l + jnp.mean(jnp.abs(x))
        return l

    def cos_rowmax(a, r):
        a_n = a / jnp.linalg.norm(a, axis=1, keepdims=True)
        r_n = r / jnp.linalg.norm(r, axis=1, keepdims=True)
        return jnp.max(a_n @ r_n.T, axis=1)

    rna_cat = jnp.concatenate(rna_embeddings, axis=0)
    rna_red = sum(red(e) for e in rna_embeddings) / len(rna_embeddings)
    atac_red = sum(red(e) for e in atac_embeddings) / len(atac_embeddings)
    sim = 0.0
    for a in atac_embeddings:
        k = int(a.shape[0] * p)
        sim = sim + jnp.mean(lax.top_k(cos_rowmax(a, rna_cat), k)[0])
    sim = sim / len(atac_embeddings)
    return rna_red + atac_red - sim   # (him + sim) / 2 == sim


if __name__ == "__main__":
    key = jax.random.PRNGKey(0)
    k1, k2, k3, k4 = jax.random.split(key, 4)
    # small shapes consistent with the module: lists of [N, dim] embeddings.
    # rna list shares a shape (exercises the batched B=2 reduction); the second atac
    # embedding has 20 rows (exercises shape-grouping, padded cdiv grid with
    # mean-padded rows, and cosine-row padding).
    rna_embeddings = [jax.random.normal(k1, (16, DIM), jnp.float32),
                      jax.random.normal(k2, (16, DIM), jnp.float32)]
    atac_embeddings = [jax.random.normal(k3, (16, DIM), jnp.float32),
                       jax.random.normal(k4, (20, DIM), jnp.float32)]

    ref = jax.block_until_ready(_reference_loss(atac_embeddings, rna_embeddings))

    # f32 MXU path. Tolerance accounts for the reformulated (algebraically identical)
    # covariance / cosine math and backend matmul-precision defaults.
    loss_f32 = jax.block_until_ready(
        encoding_loss(atac_embeddings, rna_embeddings,
                      cosine_compute_dtype=jnp.float32))
    assert jnp.allclose(loss_f32, ref, rtol=5e-3, atol=5e-3), (float(loss_f32), float(ref))

    # bf16 cosine-matmul fast path (halves streamed rna/atac bytes; 918/996 TF/s MXU
    # on v6e/v7x).  Row norms stay f32 outside the kernel.
    loss_bf16 = jax.block_until_ready(
        encoding_loss(atac_embeddings, rna_embeddings,
                      cosine_compute_dtype=jnp.bfloat16))
    assert jnp.allclose(loss_bf16, ref, rtol=3e-2, atol=3e-2), (float(loss_bf16), float(ref))

    print("KERNEL_OK")
</pallas_src>

<mosaic_0001>
module attributes {stable_mosaic.version = 11 : i64} {
  func.func @_reduction_kernel(%arg0: i32, %arg1: i32, %arg2: memref<1x16x64xf32, #tpu.memory_space<vmem>>, %arg3: memref<1x1x64xf32, #tpu.memory_space<vmem>>, %arg4: memref<1x8x128xf32, #tpu.memory_space<vmem>>, %arg5: memref<64x64xf32, #tpu.memory_space<vmem>>, %arg6: memref<8x64xf32, #tpu.memory_space<vmem>>, %arg7: memref<8x64xf32, #tpu.memory_space<vmem>>) attributes {dimension_semantics = [#tpu.dimension_semantics<parallel>, #tpu.dimension_semantics<arbitrary>], iteration_bounds = array<i64: 2, 1>, scalar_prefetch = 0 : i64, scratch_operands = 3 : i64, tpu.core_type = #tpu.core_type<tc>, window_params = [{transform_indices = @transform_0, window_bounds = array<i64: 1, 16, 64>}, {transform_indices = @transform_1, window_bounds = array<i64: 1, 1, 64>}, {transform_indices = @transform_2, window_bounds = array<i64: 1, 8, 128>}]} {
    %c0_i32 = arith.constant 0 : i32
    %0 = arith.cmpi eq, %arg1, %c0_i32 : i32
    %1 = arith.extui %0 : i1 to i32
    %c0_i32_0 = arith.constant 0 : i32
    %2 = arith.cmpi ne, %1, %c0_i32_0 : i32
    scf.if %2 {
      %cst_23 = arith.constant 0.000000e+00 : f32
      %27 = vector.broadcast %cst_23 : f32 to vector<64x64xf32>
      %c0_24 = arith.constant 0 : index
      %c0_25 = arith.constant 0 : index
      %28 = vector.load %arg5[%c0_24, %c0_25] : memref<64x64xf32, #tpu.memory_space<vmem>>, vector<64x64xf32>
      tpu.vector_store %arg5[%c0_24, %c0_25], %27 {strides = array<i32>} : memref<64x64xf32, #tpu.memory_space<vmem>>, vector<64x64xf32>,
      %cst_26 = arith.constant 0.000000e+00 : f32
      %29 = vector.broadcast %cst_26 : f32 to vector<8x64xf32>
      %c0_27 = arith.constant 0 : index
      %c0_28 = arith.constant 0 : index
      %30 = vector.load %arg6[%c0_27, %c0_28] : memref<8x64xf32, #tpu.memory_space<vmem>>, vector<8x64xf32>
      tpu.vector_store %arg6[%c0_27, %c0_28], %29 {strides = array<i32>} : memref<8x64xf32, #tpu.memory_space<vmem>>, vector<8x64xf32>,
      %cst_29 = arith.constant 0.000000e+00 : f32
      %31 = vector.broadcast %cst_29 : f32 to vector<8x64xf32>
      %c0_30 = arith.constant 0 : index
      %c0_31 = arith.constant 0 : index
      %32 = vector.load %arg7[%c0_30, %c0_31] : memref<8x64xf32, #tpu.memory_space<vmem>>, vector<8x64xf32>
      tpu.vector_store %arg7[%c0_30, %c0_31], %31 {strides = array<i32>} : memref<8x64xf32, #tpu.memory_space<vmem>>, vector<8x64xf32>,
    } else {
    }
    %c0 = arith.constant 0 : index
    %c0_1 = arith.constant 0 : index
    %c0_2 = arith.constant 0 : index
    %3 = vector.load %arg2[%c0, %c0_1, %c0_2] : memref<1x16x64xf32, #tpu.memory_space<vmem>>, vector<1x16x64xf32>
    %4 = vector.shape_cast %3 : vector<1x16x64xf32> to vector<16x64xf32>
    %c0_3 = arith.constant 0 : index
    %c0_4 = arith.constant 0 : index
    %c0_5 = arith.constant 0 : index
    %5 = vector.load %arg3[%c0_3, %c0_4, %c0_5] : memref<1x1x64xf32, #tpu.memory_space<vmem>>, vector<1x1x64xf32>
    %6 = vector.shape_cast %5 : vector<1x1x64xf32> to vector<1x64xf32>
    %7 = vector.broadcast %6 : vector<1x64xf32> to vector<16x64xf32>
    %8 = arith.subf %4, %7 : vector<16x64xf32>
    %c0_6 = arith.constant 0 : index
    %c0_7 = arith.constant 0 : index
    %9 = vector.load %arg5[%c0_6, %c0_7] : memref<64x64xf32, #tpu.memory_space<vmem>>, vector<64x64xf32>
    %cst = arith.constant dense<0.000000e+00> : vector<64x64xf32>
    %10 = tpu.matmul %8, %8, %cst {dimension_numbers = #tpu.dot_dimension_numbers<[0], [0], [1], [1], [0, 1, 1, 1], [], []>} : vector<16x64xf32>, vector<16x64xf32>, vector<64x64xf32> -> vector<64x64xf32>
    %11 = arith.addf %9, %10 : vector<64x64xf32>
    %c0_8 = arith.constant 0 : index
    %c0_9 = arith.constant 0 : index
    %12 = vector.load %arg5[%c0_8, %c0_9] : memref<64x64xf32, #tpu.memory_space<vmem>>, vector<64x64xf32>
    tpu.vector_store %arg5[%c0_8, %c0_9], %11 {strides = array<i32>} : memref<64x64xf32, #tpu.memory_space<vmem>>, vector<64x64xf32>,
    %cst_10 = arith.constant 1.000000e+00 : f32
    %13 = vector.broadcast %cst_10 : f32 to vector<8x16xf32>
    %c0_11 = arith.constant 0 : index
    %c0_12 = arith.constant 0 : index
    %14 = vector.load %arg6[%c0_11, %c0_12] : memref<8x64xf32, #tpu.memory_space<vmem>>, vector<8x64xf32>
    %15 = math.absf %4 : vector<16x64xf32>
    %cst_13 = arith.constant dense<0.000000e+00> : vector<8x64xf32>
    %16 = tpu.matmul %13, %15, %cst_13 {dimension_numbers = #tpu.dot_dimension_numbers<[1], [0], [0], [1], [0, 0, 1, 1], [], []>} : vector<8x16xf32>, vector<16x64xf32>, vector<8x64xf32> -> vector<8x64xf32>
    %17 = arith.addf %14, %16 : vector<8x64xf32>
    %c0_14 = arith.constant 0 : index
    %c0_15 = arith.constant 0 : index
    %18 = vector.load %arg6[%c0_14, %c0_15] : memref<8x64xf32, #tpu.memory_space<vmem>>, vector<8x64xf32>
    tpu.vector_store %arg6[%c0_14, %c0_15], %17 {strides = array<i32>} : memref<8x64xf32, #tpu.memory_space<vmem>>, vector<8x64xf32>,
    %c0_16 = arith.constant 0 : index
    %c0_17 = arith.constant 0 : index
    %19 = vector.load %arg7[%c0_16, %c0_17] : memref<8x64xf32, #tpu.memory_space<vmem>>, vector<8x64xf32>
    %20 = math.absf %8 : vector<16x64xf32>
    %cst_18 = arith.constant dense<0.000000e+00> : vector<8x64xf32>
    %21 = tpu.matmul %13, %20, %cst_18 {dimension_numbers = #tpu.dot_dimension_numbers<[1], [0], [0], [1], [0, 0, 1, 1], [], []>} : vector<8x16xf32>, vector<16x64xf32>, vector<8x64xf32> -> vector<8x64xf32>
    %22 = arith.addf %19, %21 : vector<8x64xf32>
    %c0_19 = arith.constant 0 : index
    %c0_20 = arith.constant 0 : index
    %23 = vector.load %arg7[%c0_19, %c0_20] : memref<8x64xf32, #tpu.memory_space<vmem>>, vector<8x64xf32>
    tpu.vector_store %arg7[%c0_19, %c0_20], %22 {strides = array<i32>} : memref<8x64xf32, #tpu.memory_space<vmem>>, vector<8x64xf32>,
    %c0_i32_21 = arith.constant 0 : i32
    %24 = arith.cmpi eq, %arg1, %c0_i32_21 : i32
    %25 = arith.extui %24 : i1 to i32
    %c0_i32_22 = arith.constant 0 : i32
    %26 = arith.cmpi ne, %25, %c0_i32_22 : i32
    scf.if %26 {
      %c0_23 = arith.constant 0 : index
      %c0_24 = arith.constant 0 : index
      %27 = vector.load %arg5[%c0_23, %c0_24] : memref<64x64xf32, #tpu.memory_space<vmem>>, vector<64x64xf32>
      %28 = tpu.iota {dimensions = array<i32: 0>} : vector<64x64xi32>
      %29 = tpu.iota {dimensions = array<i32: 1>} : vector<64x64xi32>
      %30 = arith.cmpi eq, %28, %29 : vector<64x64xi32>
      %cst_25 = arith.constant 0.000000e+00 : f32
      %31 = vector.broadcast %cst_25 : f32 to vector<64x64xf32>
      %32 = arith.select %30, %27, %31 : vector<64x64xi1>, vector<64x64xf32>
      %33 = vector.shape_cast %32 : vector<64x64xf32> to vector<1x64x64xf32>
      %cst_26 = arith.constant dense<0.000000e+00> : vector<1xf32>
      %34 = vector.multi_reduction <add>, %33, %cst_26 [1, 2] : vector<1x64x64xf32> to vector<1xf32>
      %35 = vector.shape_cast %34 : vector<1xf32> to vector<1x1x1xf32>
      %36 = vector.extract %35[0, 0, 0] : f32 from vector<1x1x1xf32>
      %cst_27 = arith.constant 1.500000e+01 : f32
      %37 = arith.divf %36, %cst_27 : f32
      %38 = math.absf %27 : vector<64x64xf32>
      %39 = vector.shape_cast %38 : vector<64x64xf32> to vector<1x64x64xf32>
      %cst_28 = arith.constant dense<0.000000e+00> : vector<1xf32>
      %40 = vector.multi_reduction <add>, %39, %cst_28 [1, 2] : vector<1x64x64xf32> to vector<1xf32>
      %41 = vector.shape_cast %40 : vector<1xf32> to vector<1x1x1xf32>
      %42 = vector.extract %41[0, 0, 0] : f32 from vector<1x1x1xf32>
      %cst_29 = arith.constant 1.500000e+01 : f32
      %43 = arith.divf %42, %cst_29 : f32
      %44 = arith.subf %43, %37 : f32
      %cst_30 = arith.constant 5.000000e-01 : f32
      %45 = arith.mulf %44, %cst_30 : f32
      %cst_31 = arith.constant 4.096000e+03 : f32
      %46 = arith.divf %45, %cst_31 : f32
      %c0_32 = arith.constant 0 : index
      %c0_33 = arith.constant 0 : index
      %47 = vector.load %arg7[%c0_32, %c0_33] : memref<8x64xf32, #tpu.memory_space<vmem>>, vector<8x64xf32>
      %48 = vector.shape_cast %47 : vector<8x64xf32> to vector<1x8x64xf32>
      %cst_34 = arith.constant dense<0.000000e+00> : vector<1xf32>
      %49 = vector.multi_reduction <add>, %48, %cst_34 [1, 2] : vector<1x8x64xf32> to vector<1xf32>
      %50 = vector.shape_cast %49 : vector<1xf32> to vector<1x1x1xf32>
      %51 = vector.extract %50[0, 0, 0] : f32 from vector<1x1x1xf32>
      %cst_35 = arith.constant 8.000000e+00 : f32
      %52 = arith.divf %51, %cst_35 : f32
      %c0_36 = arith.constant 0 : index
      %c0_37 = arith.constant 0 : index
      %53 = vector.load %arg6[%c0_36, %c0_37] : memref<8x64xf32, #tpu.memory_space<vmem>>, vector<8x64xf32>
      %54 = vector.shape_cast %53 : vector<8x64xf32> to vector<1x8x64xf32>
      %cst_38 = arith.constant dense<0.000000e+00> : vector<1xf32>
      %55 = vector.multi_reduction <add>, %54, %cst_38 [1, 2] : vector<1x8x64xf32> to vector<1xf32>
      %56 = vector.shape_cast %55 : vector<1xf32> to vector<1x1x1xf32>
      %57 = vector.extract %56[0, 0, 0] : f32 from vector<1x1x1xf32>
      %cst_39 = arith.constant 8.000000e+00 : f32
      %58 = arith.divf %57, %cst_39 : f32
      %59 = math.absf %6 : vector<1x64xf32>
      %60 = vector.shape_cast %59 : vector<1x64xf32> to vector<1x1x64xf32>
      %cst_40 = arith.constant dense<0.000000e+00> : vector<1xf32>
      %61 = vector.multi_reduction <add>, %60, %cst_40 [1, 2] : vector<1x1x64xf32> to vector<1xf32>
      %62 = vector.shape_cast %61 : vector<1xf32> to vector<1x1x1xf32>
      %63 = vector.extract %62[0, 0, 0] : f32 from vector<1x1x1xf32>
      %cst_41 = arith.constant 0.000000e+00 : f32
      %64 = arith.mulf %cst_41, %63 : f32
      %65 = arith.subf %58, %64 : f32
      %cst_42 = arith.constant 1.024000e+03 : f32
      %66 = arith.divf %cst_42, %52 : f32
      %cst_43 = arith.constant 1.024000e+03 : f32
      %67 = arith.divf %65, %cst_43 : f32
      %68 = arith.addf %46, %66 : f32
      %69 = arith.addf %68, %67 : f32
      %70 = vector.broadcast %69 : f32 to vector<8x128xf32>
      %c0_44 = arith.constant 0 : index
      %c0_45 = arith.constant 0 : index
      %c0_46 = arith.constant 0 : index
      %71 = vector.load %arg4[%c0_44, %c0_45, %c0_46] : memref<1x8x128xf32, #tpu.memory_space<vmem>>, vector<1x8x128xf32>
      %72 = vector.shape_cast %71 : vector<1x8x128xf32> to vector<8x128xf32>
      %73 = vector.shape_cast %70 : vector<8x128xf32> to vector<1x8x128xf32>
      tpu.vector_store %arg4[%c0_44, %c0_45, %c0_46], %73 {strides = array<i32>} : memref<1x8x128xf32, #tpu.memory_space<vmem>>, vector<1x8x128xf32>,
    } else {
    }
    return
  }
  func.func @transform_0(%arg0: i32, %arg1: i32) -> (i32, i32, i32) {
    %c0_i32 = arith.constant 0 : i32
    %c0_i32_0 = arith.constant 0 : i32
    return %arg0, %arg1, %c0_i32 : i32, i32, i32
  }
  func.func @transform_1(%arg0: i32, %arg1: i32) -> (i32, i32, i32) {
    %c0_i32 = arith.constant 0 : i32
    %c0_i32_0 = arith.constant 0 : i32
    %c0_i32_1 = arith.constant 0 : i32
    return %arg0, %c0_i32, %c0_i32_0 : i32, i32, i32
  }
  func.func @transform_2(%arg0: i32, %arg1: i32) -> (i32, i32, i32) {
    %c0_i32 = arith.constant 0 : i32
    %c0_i32_0 = arith.constant 0 : i32
    %c0_i32_1 = arith.constant 0 : i32
    return %arg0, %c0_i32, %c0_i32_0 : i32, i32, i32
  }
}

</mosaic_0001>

<llo_original>
// kernel: tpu_custom_call.1
$region0: #{tpu_custom_call.1}
  #allocation0 [shape = 'u32[]', space=smem, size = 0x4, offset = 0x4, fixed_abs, tag = 'smem constant byte address 0x4 - core index']
  #allocation1 [shape = 'u32[144,128]{1,0:T(1,128)}', space=vmem, size = 0x12000, scoped, tag = 'internal scratch']
  #allocation2 [shape = 'f32[64,64]{1,0:T(8,128)}', space=vmem, size = 0x8000, scoped, tag = 'scratch operand']
  #allocation3 [shape = 'f32[8,64]{1,0:T(8,128)}', space=vmem, size = 0x1000, scoped, tag = 'scratch operand']
  #allocation4 [shape = 'f32[8,64]{1,0:T(8,128)}', space=vmem, size = 0x1000, scoped, tag = 'scratch operand']
  %s0 = inlined_call_operand.hbm [shape: f32[2,16,64], index: 0, kind: input, shape index: {}]
  %s1 = inlined_call_operand.vmem [shape: f32[2,1,64], index: 1, kind: input, shape index: {}]
  %s2 = inlined_call_operand.hbm [shape: f32[2,8,128], index: 2, kind: output, shape index: {}]
  %s3 = sld [smem:[#allocation0]]
  $region53: #{tpu_custom_call.1} parent=0
    _
  %s5 = ssub.s32 1, %s3
  %s6 = scalar_select 0, %s5, %s3
  $region1: #{tpu_custom_call.1} parent=0
    #allocation5 [shape = 'u8[16384]{0}', space=vmem, size = 0x4000, scoped, tag = 'input window, operand 0']
    #allocation6 [shape = 's32[2]{0}', space=sflag, size = 0x8, scoped, tag = 'scoped memory for tpu_custom_call.1']
    #allocation7 [shape = 's32[2]{0}', space=sflag, size = 0x8, scoped, tag = 'scoped memory for tpu_custom_call.1']
    #allocation8 [shape = 'u8[8192]{0}', space=vmem, size = 0x2000, scoped, tag = 'output window, operand 0']
    %7 = vsyncpa [#allocation6], 0
    %s8 = scalar_lea.sflag [#allocation6], 1
    %9 = vsyncpa %s8, 0
    %10 = vsyncpa [#allocation7], 0
    %s11 = scalar_lea.sflag [#allocation7], 1
    %12 = vsyncpa %s11, 0
    loop: start=0, step=1, limit=4
    $region2: #{tpu_custom_call.1} parent=1 // loop_pre_header
      _
    $region3: #{tpu_custom_call.1} parent=1 // loop_header
      %s14 = sphi 0, %s18
      %p15 = scmp.ge.s32.totalorder %s14, 4
      %s21 = sphi 0, %s33
      %s22 = sphi 0, %s29
      %s23 = sphi 0, %s21
      %s24 = sphi 0, %s22
      %s25 = sphi 0, %s23
      %s26 = sphi 0, %s24
      %s38 = sphi 0, %s40
      %s41 = sphi 0, %s38
      %s42 = sphi 0, %s41
      %s58 = sphi 0, %s42
      %s64 = sphi 0, %s66
      %s67 = sphi 0, %s64
      %s68 = sphi 0, %s67
      %s84 = sphi 0, %s68
      %s90 = sphi 0, %s92
      %s93 = sphi 0, %s90
      %s94 = sphi 0, %s93
      %s110 = sphi 0, %s94
    $region4: #{tpu_custom_call.1} parent=1 // loop_header_branch
      %17 = sbr.rel (%p15) target = $region8
    $region5: #{tpu_custom_call.1} parent=1 // loop_body
      %s19 = ssub.s32 %s14, 1
      %s20 = ssub.s32 %s14, 2
      %s27 = sadd.s32 1, %s22
      %p28 = scmp.ge.s32.totalorder %s27, 1
      %s29 = scalar_select %p28, 0, %s27
      %s30 = sadd.s32 1, %s21
      %s31 = scalar_select %p28, %s30, %s21
      %p32 = scmp.ge.s32.totalorder %s31, 2
      %s33 = scalar_select %p32, 0, %s31
      %s34 = ssub.s32 %s21, %s33
      %s35 = ssub.s32 %s22, %s29
      %s36 = sor.u32 %s34, %s35
      %p37 = scmp.eq.s32.totalorder %s36, 0
      %s39 = sadd.s32 %s38, 1
      %s40 = scalar_select %p37, %s38, %s39
      %p43 = pneg %p37
      %p44 = scmp.eq.s32.totalorder %s14, 1
      %p45 = por %p43, %p44
      %p46 = scmp.ne.s32.totalorder %s38, %s41
      %p47 = scmp.eq.s32.totalorder %s14, 0
      %p48 = por %p46, %p47
      %p49 = scmp.ne.s32.totalorder %s38, %s41
      %p50 = scmp.eq.s32.totalorder %s19, 1
      %p51 = por %p49, %p50
      %p52 = scmp.ne.s32.totalorder %s41, %s42
      %p53 = scmp.eq.s32.totalorder %s19, 0
      %p54 = por %p52, %p53
      %p55 = scmp.ne.s32.totalorder %s41, %s42
      %p56 = scmp.eq.s32.totalorder %s20, 1
      %p57 = por %p55, %p56
      %p59 = scmp.ne.s32.totalorder %s42, %s58
      %p60 = scmp.eq.s32.totalorder %s20, 0
      %p61 = por %p59, %p60
      %s62 = ssub.s32 %s21, %s33
      %p63 = scmp.eq.s32.totalorder %s62, 0
      %s65 = sadd.s32 %s64, 1
      %s66 = scalar_select %p63, %s64, %s65
      %p69 = pneg %p63
      %p70 = scmp.eq.s32.totalorder %s14, 1
      %p71 = por %p69, %p70
      %p72 = scmp.ne.s32.totalorder %s64, %s67
      %p73 = scmp.eq.s32.totalorder %s14, 0
      %p74 = por %p72, %p73
      %p75 = scmp.ne.s32.totalorder %s64, %s67
      %p76 = scmp.eq.s32.totalorder %s19, 1
      %p77 = por %p75, %p76
      %p78 = scmp.ne.s32.totalorder %s67, %s68
      %p79 = scmp.eq.s32.totalorder %s19, 0
      %p80 = por %p78, %p79
      %p81 = scmp.ne.s32.totalorder %s67, %s68
      %p82 = scmp.eq.s32.totalorder %s20, 1
      %p83 = por %p81, %p82
      %p85 = scmp.ne.s32.totalorder %s68, %s84
      %p86 = scmp.eq.s32.totalorder %s20, 0
      %p87 = por %p85, %p86
      %s88 = ssub.s32 %s21, %s33
      %p89 = scmp.eq.s32.totalorder %s88, 0
      %s91 = sadd.s32 %s90, 1
      %s92 = scalar_select %p89, %s90, %s91
      %p95 = pneg %p89
      %p96 = scmp.eq.s32.totalorder %s14, 1
      %p97 = por %p95, %p96
      %p98 = scmp.ne.s32.totalorder %s90, %s93
      %p99 = scmp.eq.s32.totalorder %s14, 0
      %p100 = por %p98, %p99
      %p101 = scmp.ne.s32.totalorder %s90, %s93
      %p102 = scmp.eq.s32.totalorder %s19, 1
      %p103 = por %p101, %p102
      %p104 = scmp.ne.s32.totalorder %s93, %s94
      %p105 = scmp.eq.s32.totalorder %s19, 0
      %p106 = por %p104, %p105
      %p107 = scmp.ne.s32.totalorder %s93, %s94
      %p108 = scmp.eq.s32.totalorder %s20, 1
      %p109 = por %p107, %p108
      %p111 = scmp.ne.s32.totalorder %s94, %s110
      %p112 = scmp.eq.s32.totalorder %s20, 0
      %p113 = por %p111, %p112
      %p114 = scmp.le.s32.totalorder 1, %s14
      %p115 = scmp.lt.s32.totalorder %s14, 3
      %p116 = pnand %p114, %p115
      %p117 = pneg %p116
      // Predicated region
      $region9: #{tpu_custom_call.1} parent=5 // pred_check
        _
      $region10: #{tpu_custom_call.1} parent=5 // pred_check_branch
        %119 = sbr.rel (%p116) target = $region12
      $region11: #{tpu_custom_call.1} parent=5 // pred_region
        %s120 = ssub.s32 %s14, 1
      $region12: #{tpu_custom_call.1} parent=5 // pred_fallthru
        _
      %p121 = scmp.lt.s32.totalorder %s14, 2
      // Predicated region
      $region13: #{tpu_custom_call.1} parent=5 // pred_check
        %p122 = pneg %p121
      $region14: #{tpu_custom_call.1} parent=5 // pred_check_branch
        %124 = sbr.rel (%p122) target = $region16
      $region15: #{tpu_custom_call.1} parent=5 // pred_region
        // Predicated region
        $region17: #{tpu_custom_call.1} parent=15 // pred_check
          %p125 = pneg %p48
        $region18: #{tpu_custom_call.1} parent=15 // pred_check_branch
          %127 = sbr.rel (%p125) target = $region20
        $region19: #{tpu_custom_call.1} parent=15 // pred_region
          %s128 = sand.u32 %s38, 1
          %s129 = scalar_lea.sflag [#allocation6], %s128
          %s130 = sand.u32 %s38, 1
          %s131 = smul.addr %s130, 16
          %s132 = scalar_lea.vmem [#allocation5], %s131
          %s133 = smul.u32 2, %s22
          %s135 = ssub.s32 256, 256
          %136 = vsyncadd %s129, %s135
          %s137 = smul.addr %s21, 2
          %s138 = sadd.s32 %s133, %s137
          %s139 = smul.addr %s138, 128
          %s140 = scalar_lea.hbm %s0, %s139
          %s141 = sshll.u32 %s132, 4
          %s142 = int_to_ptr.vmem [resolvable:$true] %s141
          %147 = dma.hbm_to_vmem [thread:$0]  %s140, 256, %s142, %s129, 128, 128, 8
        $region20: #{tpu_custom_call.1} parent=15 // pred_fallthru
          _
        // Predicated region
        $region21: #{tpu_custom_call.1} parent=15 // pred_check
          %p148 = pneg %p74
        $region22: #{tpu_custom_call.1} parent=15 // pred_check_branch
          %150 = sbr.rel (%p148) target = $region24
        $region23: #{tpu_custom_call.1} parent=15 // pred_region
          %p151 = scmp.lt.s32.totalorder %s21, 1
          %s152 = scalar_select %p151, %s21, 1
          %s153 = scalar_lea.vmem %s1, %s152
        $region24: #{tpu_custom_call.1} parent=15 // pred_fallthru
          _
      $region16: #{tpu_custom_call.1} parent=5 // pred_fallthru
        _
      %p154 = scmp.le.s32.totalorder 1, %s14
      %p155 = scmp.lt.s32.totalorder %s14, 3
      %p156 = pnand %p154, %p155
      %p157 = pneg %p156
      // Predicated region
      $region25: #{tpu_custom_call.1} parent=5 // pred_check
        _
      $region26: #{tpu_custom_call.1} parent=5 // pred_check_branch
        %159 = sbr.rel (%p156) target = $region28
      $region27: #{tpu_custom_call.1} parent=5 // pred_region
        %s160 = ssub.s32 %s14, 1
        %s161 = sand.u32 %s41, 1
        %s162 = scalar_lea.sflag [#allocation6], %s161
        %s163 = sand.u32 %s41, 1
        %s164 = smul.addr %s163, 16
        %s165 = scalar_lea.vmem [#allocation5], %s164
        // Predicated region
        $region29: #{tpu_custom_call.1} parent=27 // pred_check
          %p166 = pneg %p54
        $region30: #{tpu_custom_call.1} parent=27 // pred_check_branch
          %168 = sbr.rel (%p166) target = $region32
        $region31: #{tpu_custom_call.1} parent=27 // pred_region
          %169 = dma.done %s162, 256
        $region32: #{tpu_custom_call.1} parent=27 // pred_fallthru
          _
        %s170 = sand.u32 %s41, 1
        %s171 = scalar_lea.sflag [#allocation6], %s170
        %s172 = sand.u32 %s41, 1
        %s173 = smul.addr %s172, 16
        %s174 = scalar_lea.vmem [#allocation5], %s173
        %p175 = pneg %p54
        %p176 = pneg %p51
        %p177 = scmp.lt.s32.totalorder %s23, 1
        %s178 = scalar_select %p177, %s23, 1
        %s179 = scalar_lea.vmem %s1, %s178
        %p180 = pneg %p80
        %p181 = pneg %p77
        %p182 = pneg %p106
        %p183 = pneg %p103
        %s184 = sand.u32 %s93, 1
        %s185 = scalar_lea.sflag [#allocation7], %s184
        %s186 = sand.u32 %s93, 1
        %s187 = smul.addr %s186, 8
        %s188 = scalar_lea.vmem [#allocation8], %s187
        %s189 = smul.u32 2, %s24
        %p190 = scmp.lt.s32.totalorder %s23, 1
        %s191 = scalar_select %p190, %s23, 1
        %s192 = scalar_lea.vmem %s1, %s191
        %p193 = scmp.eq.s32.totalorder %s24, 0
        // Predicated region
        $region33: #{tpu_custom_call.1} parent=27 // pred_check
          %p194 = pneg %p193
        $region34: #{tpu_custom_call.1} parent=27 // pred_check_branch
          %196 = sbr.rel (%p194) target = $region36
        $region35: #{tpu_custom_call.1} parent=27 // pred_region
          %vm197 = vcmask 523264
          %198 = vst.msk [vmem:[#allocation2] sm:$0xff] %vm197, 0.0
          %199 = vst.msk [vmem:[#allocation2 + $0x8] sm:$0xff] %vm197, 0.0
          %200 = vst.msk [vmem:[#allocation2 + $0x10] sm:$0xff] %vm197, 0.0
          %201 = vst.msk [vmem:[#allocation2 + $0x18] sm:$0xff] %vm197, 0.0
          %202 = vst.msk [vmem:[#allocation2 + $0x20] sm:$0xff] %vm197, 0.0
          %203 = vst.msk [vmem:[#allocation2 + $0x28] sm:$0xff] %vm197, 0.0
          %204 = vst.msk [vmem:[#allocation2 + $0x30] sm:$0xff] %vm197, 0.0
          %205 = vst.msk [vmem:[#allocation2 + $0x38] sm:$0xff] %vm197, 0.0
          %206 = vst.msk [vmem:[#allocation3] sm:$0xff] %vm197, 0.0
          %207 = vst.msk [vmem:[#allocation4] sm:$0xff] %vm197, 0.0
        $region36: #{tpu_custom_call.1} parent=27 // pred_fallthru
          _
        %v208 = vld [vmem:[%s165] sm:$0xff]
        %v209 = vld [vmem:[%s165 + $0x8] sm:$0xff]
        %v210 = vld [vmem:[%s192] sm:$0x1]
        %v212 = vlaneseq
        %v213 = vshrl.u32 %v212, 7
        %v214 = vsub.s32 0, %v213
        %v215 = vrot.slane %v210, %v214
        %v217 = vsub.f32 %v208, %v215
        %v218 = vsub.f32 %v209, %v215
        %v219 = vld [vmem:[#allocation2] sm:$0xff]
        %v220 = vld [vmem:[#allocation2 + $0x8] sm:$0xff]
        %v221 = vld [vmem:[#allocation2 + $0x10] sm:$0xff]
        %v222 = vld [vmem:[#allocation2 + $0x18] sm:$0xff]
        %v223 = vld [vmem:[#allocation2 + $0x20] sm:$0xff]
        %v224 = vld [vmem:[#allocation2 + $0x28] sm:$0xff]
        %v225 = vld [vmem:[#allocation2 + $0x30] sm:$0xff]
        %v226 = vld [vmem:[#allocation2 + $0x38] sm:$0xff]
        %227 = vxpose.xlu0.b32.start [1/16] %v217, 128
        %228 = vxpose.xlu0.b32.cont [2/16] %v218, 128
        %229 = vxpose.xlu0.b32.cont [3/16] 0.0, 128
        %230 = vxpose.xlu0.b32.cont [4/16] 0.0, 128
        %231 = vxpose.xlu0.b32.cont [5/16] 0.0, 128
        %232 = vxpose.xlu0.b32.cont [6/16] 0.0, 128
        %233 = vxpose.xlu0.b32.cont [7/16] 0.0, 128
        %234 = vxpose.xlu0.b32.cont [8/16] 0.0, 128
        %235 = vxpose.xlu0.b32.cont [9/16] 0.0, 128
        %236 = vxpose.xlu0.b32.cont [10/16] 0.0, 128
        %237 = vxpose.xlu0.b32.cont [11/16] 0.0, 128
        %238 = vxpose.xlu0.b32.cont [12/16] 0.0, 128
        %239 = vxpose.xlu0.b32.cont [13/16] 0.0, 128
        %240 = vxpose.xlu0.b32.cont [14/16] 0.0, 128
        %241 = vxpose.xlu0.b32.cont [15/16] 0.0, 128
        %242 = vxpose.xlu0.b32.end [16/16] 0.0, 128
        %v243 = vpop.trf.xlu0
        %v244 = vpop.trf.xlu0
        %v245 = vpop.trf.xlu0
        %v246 = vpop.trf.xlu0
        %v247 = vpop.trf.xlu0
        %v248 = vpop.trf.xlu0
        %v249 = vpop.trf.xlu0
        %v250 = vpop.trf.xlu0
        %v251 = vpop.trf.xlu0
        %v252 = vpop.trf.xlu0
        %v253 = vpop.trf.xlu0
        %v254 = vpop.trf.xlu0
        %v255 = vpop.trf.xlu0
        %v256 = vpop.trf.xlu0
        %v257 = vpop.trf.xlu0
        %v258 = vpop.trf.xlu0
        %vm259 = vcmask 130048
        %v261 = vsel %vm259, %v243, 0
        %v264 = vsel %vm259, %v244, 0
        %v267 = vsel %vm259, %v245, 0
        %v270 = vsel %vm259, %v246, 0
        %v273 = vsel %vm259, %v247, 0
        %v276 = vsel %vm259, %v248, 0
        %v279 = vsel %vm259, %v249, 0
        %v282 = vsel %vm259, %v250, 0
        %284 = vmatprep.subr.mxu0 0.0
        %285 = vmatpush1.msra.mxu0 %v217
        %286 = vmatprep.subr.mxu0 0.0
        %287 = vmatpush1.msra.mxu0 %v218
        %288 = vmatprep.subr.mxu0 0.0
        %289 = vmatpush1.msra.mxu0 0.0
        %290 = vmatprep.subr.mxu0 0.0
        %291 = vmatpush1.msra.mxu0 0.0
        %292 = vmatprep.subr.mxu0 0.0
        %293 = vmatpush1.msra.mxu0 0.0
        %294 = vmatprep.subr.mxu0 0.0
        %295 = vmatpush1.msra.mxu0 0.0
        %296 = vmatprep.subr.mxu0 0.0
        %297 = vmatpush1.msra.mxu0 0.0
        %298 = vmatprep.subr.mxu0 0.0
        %299 = vmatpush1.msra.mxu0 0.0
        %300 = vmatprep.subr.mxu0 0.0
        %301 = vmatpush1.msra.mxu0 0.0
        %302 = vmatprep.subr.mxu0 0.0
        %303 = vmatpush1.msra.mxu0 0.0
        %304 = vmatprep.subr.mxu0 0.0
        %305 = vmatpush1.msra.mxu0 0.0
        %306 = vmatprep.subr.mxu0 0.0
        %307 = vmatpush1.msra.mxu0 0.0
        %308 = vmatprep.subr.mxu0 0.0
        %309 = vmatpush1.msra.mxu0 0.0
        %310 = vmatprep.subr.mxu0 0.0
        %311 = vmatpush1.msra.mxu0 0.0
        %312 = vmatprep.subr.mxu0 0.0
        %313 = vmatpush1.msra.mxu0 0.0
        %314 = vmatprep.subr.mxu0 0.0
        %315 = vmatpush1.msra.mxu0 0.0
        %316 = vmatprep.subr.mxu0 0.0
        %317 = vmatpush1.msra.mxu0 0.0
        %318 = vmatprep.subr.mxu0 0.0
        %319 = vmatpush1.msra.mxu0 0.0
        %320 = vmatprep.subr.mxu0 0.0
        %321 = vmatpush1.msra.mxu0 0.0
        %322 = vmatprep.subr.mxu0 0.0
        %323 = vmatpush1.msra.mxu0 0.0
        %324 = vmatprep.subr.mxu0 0.0
        %325 = vmatpush1.msra.mxu0 0.0
        %326 = vmatprep.subr.mxu0 0.0
        %327 = vmatpush1.msra.mxu0 0.0
        %328 = vmatprep.subr.mxu0 0.0
        %329 = vmatpush1.msra.mxu0 0.0
        %330 = vmatprep.subr.mxu0 0.0
        %331 = vmatpush1.msra.mxu0 0.0
        %332 = vmatprep.subr.mxu0 0.0
        %333 = vmatpush1.msra.mxu0 0.0
        %334 = vmatprep.subr.mxu0 0.0
        %335 = vmatpush1.msra.mxu0 0.0
        %336 = vmatprep.subr.mxu0 0.0
        %337 = vmatpush1.msra.mxu0 0.0
        %338 = vmatprep.subr.mxu0 0.0
        %339 = vmatpush1.msra.mxu0 0.0
        %340 = vmatprep.subr.mxu0 0.0
        %341 = vmatpush1.msra.mxu0 0.0
        %342 = vmatprep.subr.mxu0 0.0
        %343 = vmatpush1.msra.mxu0 0.0
        %344 = vmatprep.subr.mxu0 0.0
        %345 = vmatpush1.msra.mxu0 0.0
        %346 = vmatprep.subr.mxu0 0.0
        %347 = vmatpush1.msra.mxu0 0.0
        %348 = vmatprep.mubr.f32.mxu0 0.0
        %349 = vmatmul.mubr.f32.gmra.mrb[0].mxu0 %v261
        %v350 = vpop.f32.mrb[0].mxu0
        %v351 = vadd.f32 0.0, %v350
        %v352 = vpop.f32.mrb[0].mxu0
        %353 = vmatprep.mubr.f32.mxu0 0.0
        %354 = vmatmul.mubr.f32.gmra.mrb[0].mxu0 %v264
        %v355 = vpop.f32.mrb[0].mxu0
        %v356 = vadd.f32 0.0, %v355
        %v357 = vpop.f32.mrb[0].mxu0
        %358 = vmatprep.mubr.f32.mxu0 0.0
        %359 = vmatmul.mubr.f32.gmra.mrb[0].mxu0 %v267
        %v360 = vpop.f32.mrb[0].mxu0
        %v361 = vadd.f32 0.0, %v360
        %v362 = vpop.f32.mrb[0].mxu0
        %363 = vmatprep.mubr.f32.mxu0 0.0
        %364 = vmatmul.mubr.f32.gmra.mrb[0].mxu0 %v270
        %v365 = vpop.f32.mrb[0].mxu0
        %v366 = vadd.f32 0.0, %v365
        %v367 = vpop.f32.mrb[0].mxu0
        %368 = vmatprep.mubr.f32.mxu0 0.0
        %369 = vmatmul.mubr.f32.gmra.mrb[0].mxu0 %v273
        %v370 = vpop.f32.mrb[0].mxu0
        %v371 = vadd.f32 0.0, %v370
        %v372 = vpop.f32.mrb[0].mxu0
        %373 = vmatprep.mubr.f32.mxu0 0.0
        %374 = vmatmul.mubr.f32.gmra.mrb[0].mxu0 %v276
        %v375 = vpop.f32.mrb[0].mxu0
        %v376 = vadd.f32 0.0, %v375
        %v377 = vpop.f32.mrb[0].mxu0
        %378 = vmatprep.mubr.f32.mxu0 0.0
        %379 = vmatmul.mubr.f32.gmra.mrb[0].mxu0 %v279
        %v380 = vpop.f32.mrb[0].mxu0
        %v381 = vadd.f32 0.0, %v380
        %v382 = vpop.f32.mrb[0].mxu0
        %383 = vmatprep.mubr.f32.mxu0 0.0
        %384 = vmatmul.mubr.f32.gmra.mrb[0].mxu0 %v282
        %v385 = vpop.f32.mrb[0].mxu0
        %v386 = vadd.f32 0.0, %v385
        %v387 = vpop.f32.mrb[0].mxu0
        %388 = vdwg.mxu0
        %v389 = vadd.f32 %v219, %v351
        %v390 = vadd.f32 %v220, %v356
        %v391 = vadd.f32 %v221, %v361
        %v392 = vadd.f32 %v222, %v366
        %v393 = vadd.f32 %v223, %v371
        %v394 = vadd.f32 %v224, %v376
        %v395 = vadd.f32 %v225, %v381
        %v396 = vadd.f32 %v226, %v386
        %vm397 = vcmask 523264
        %398 = vst.msk [vmem:[#allocation2] sm:$0xff] %vm397, %v389
        %399 = vst.msk [vmem:[#allocation2 + $0x8] sm:$0xff] %vm397, %v390
        %400 = vst.msk [vmem:[#allocation2 + $0x10] sm:$0xff] %vm397, %v391
        %401 = vst.msk [vmem:[#allocation2 + $0x18] sm:$0xff] %vm397, %v392
        %402 = vst.msk [vmem:[#allocation2 + $0x20] sm:$0xff] %vm397, %v393
        %403 = vst.msk [vmem:[#allocation2 + $0x28] sm:$0xff] %vm397, %v394
        %404 = vst.msk [vmem:[#allocation2 + $0x30] sm:$0xff] %vm397, %v395
        %405 = vst.msk [vmem:[#allocation2 + $0x38] sm:$0xff] %vm397, %v396
        %v406 = vld [vmem:[#allocation3] sm:$0xff]
        %v407 = vand.u32 2147483647, %v208
        %v408 = vand.u32 2147483647, %v209
        %v410 = vsel %vm259, 1.0, 0
        %412 = vmatprep.subr.mxu0 0.0
        %413 = vmatpush1.msra.mxu0 %v407
        %414 = vmatprep.subr.mxu0 0.0
        %415 = vmatpush1.msra.mxu0 %v408
        %416 = vmatprep.subr.mxu0 0.0
        %417 = vmatpush1.msra.mxu0 0.0
        %418 = vmatprep.subr.mxu0 0.0
        %419 = vmatpush1.msra.mxu0 0.0
        %420 = vmatprep.subr.mxu0 0.0
        %421 = vmatpush1.msra.mxu0 0.0
        %422 = vmatprep.subr.mxu0 0.0
        %423 = vmatpush1.msra.mxu0 0.0
        %424 = vmatprep.subr.mxu0 0.0
        %425 = vmatpush1.msra.mxu0 0.0
        %426 = vmatprep.subr.mxu0 0.0
        %427 = vmatpush1.msra.mxu0 0.0
        %428 = vmatprep.subr.mxu0 0.0
        %429 = vmatpush1.msra.mxu0 0.0
        %430 = vmatprep.subr.mxu0 0.0
        %431 = vmatpush1.msra.mxu0 0.0
        %432 = vmatprep.subr.mxu0 0.0
        %433 = vmatpush1.msra.mxu0 0.0
        %434 = vmatprep.subr.mxu0 0.0
        %435 = vmatpush1.msra.mxu0 0.0
        %436 = vmatprep.subr.mxu0 0.0
        %437 = vmatpush1.msra.mxu0 0.0
        %438 = vmatprep.subr.mxu0 0.0
        %439 = vmatpush1.msra.mxu0 0.0
        %440 = vmatprep.subr.mxu0 0.0
        %441 = vmatpush1.msra.mxu0 0.0
        %442 = vmatprep.subr.mxu0 0.0
        %443 = vmatpush1.msra.mxu0 0.0
        %444 = vmatprep.subr.mxu0 0.0
        %445 = vmatpush1.msra.mxu0 0.0
        %446 = vmatprep.subr.mxu0 0.0
        %447 = vmatpush1.msra.mxu0 0.0
        %448 = vmatprep.subr.mxu0 0.0
        %449 = vmatpush1.msra.mxu0 0.0
        %450 = vmatprep.subr.mxu0 0.0
        %451 = vmatpush1.msra.mxu0 0.0
        %452 = vmatprep.subr.mxu0 0.0
        %453 = vmatpush1.msra.mxu0 0.0
        %454 = vmatprep.subr.mxu0 0.0
        %455 = vmatpush1.msra.mxu0 0.0
        %456 = vmatprep.subr.mxu0 0.0
        %457 = vmatpush1.msra.mxu0 0.0
        %458 = vmatprep.subr.mxu0 0.0
        %459 = vmatpush1.msra.mxu0 0.0
        %460 = vmatprep.subr.mxu0 0.0
        %461 = vmatpush1.msra.mxu0 0.0
        %462 = vmatprep.subr.mxu0 0.0
        %463 = vmatpush1.msra.mxu0 0.0
        %464 = vmatprep.subr.mxu0 0.0
        %465 = vmatpush1.msra.mxu0 0.0
        %466 = vmatprep.subr.mxu0 0.0
        %467 = vmatpush1.msra.mxu0 0.0
        %468 = vmatprep.subr.mxu0 0.0
        %469 = vmatpush1.msra.mxu0 0.0
        %470 = vmatprep.subr.mxu0 0.0
        %471 = vmatpush1.msra.mxu0 0.0
        %472 = vmatprep.subr.mxu0 0.0
        %473 = vmatpush1.msra.mxu0 0.0
        %474 = vmatprep.subr.mxu0 0.0
        %475 = vmatpush1.msra.mxu0 0.0
        %476 = vmatprep.mubr.f32.mxu0 0.0
        %477 = vmatmul.mubr.f32.gmra.mrb[0].mxu0 %v410
        %v478 = vpop.f32.mrb[0].mxu0
        %v479 = vadd.f32 0.0, %v478
        %v480 = vpop.f32.mrb[0].mxu0
        %481 = vdwg.mxu0
        %v482 = vadd.f32 %v406, %v479
        %483 = vst.msk [vmem:[#allocation3] sm:$0xff] %vm397, %v482
        %v484 = vld [vmem:[#allocation4] sm:$0xff]
        %v485 = vand.u32 2147483647, %v217
        %v486 = vand.u32 2147483647, %v218
        %487 = vmatprep.subr.mxu0 0.0
        %488 = vmatpush1.msra.mxu0 %v485
        %489 = vmatprep.subr.mxu0 0.0
        %490 = vmatpush1.msra.mxu0 %v486
        %491 = vmatprep.subr.mxu0 0.0
        %492 = vmatpush1.msra.mxu0 0.0
        %493 = vmatprep.subr.mxu0 0.0
        %494 = vmatpush1.msra.mxu0 0.0
        %495 = vmatprep.subr.mxu0 0.0
        %496 = vmatpush1.msra.mxu0 0.0
        %497 = vmatprep.subr.mxu0 0.0
        %498 = vmatpush1.msra.mxu0 0.0
        %499 = vmatprep.subr.mxu0 0.0
        %500 = vmatpush1.msra.mxu0 0.0
        %501 = vmatprep.subr.mxu0 0.0
        %502 = vmatpush1.msra.mxu0 0.0
        %503 = vmatprep.subr.mxu0 0.0
        %504 = vmatpush1.msra.mxu0 0.0
        %505 = vmatprep.subr.mxu0 0.0
        %506 = vmatpush1.msra.mxu0 0.0
        %507 = vmatprep.subr.mxu0 0.0
        %508 = vmatpush1.msra.mxu0 0.0
        %509 = vmatprep.subr.mxu0 0.0
        %510 = vmatpush1.msra.mxu0 0.0
        %511 = vmatprep.subr.mxu0 0.0
        %512 = vmatpush1.msra.mxu0 0.0
        %513 = vmatprep.subr.mxu0 0.0
        %514 = vmatpush1.msra.mxu0 0.0
        %515 = vmatprep.subr.mxu0 0.0
        %516 = vmatpush1.msra.mxu0 0.0
        %517 = vmatprep.subr.mxu0 0.0
        %518 = vmatpush1.msra.mxu0 0.0
        %519 = vmatprep.subr.mxu0 0.0
        %520 = vmatpush1.msra.mxu0 0.0
        %521 = vmatprep.subr.mxu0 0.0
        %522 = vmatpush1.msra.mxu0 0.0
        %523 = vmatprep.subr.mxu0 0.0
        %524 = vmatpush1.msra.mxu0 0.0
        %525 = vmatprep.subr.mxu0 0.0
        %526 = vmatpush1.msra.mxu0 0.0
        %527 = vmatprep.subr.mxu0 0.0
        %528 = vmatpush1.msra.mxu0 0.0
        %529 = vmatprep.subr.mxu0 0.0
        %530 = vmatpush1.msra.mxu0 0.0
        %531 = vmatprep.subr.mxu0 0.0
        %532 = vmatpush1.msra.mxu0 0.0
        %533 = vmatprep.subr.mxu0 0.0
        %534 = vmatpush1.msra.mxu0 0.0
        %535 = vmatprep.subr.mxu0 0.0
        %536 = vmatpush1.msra.mxu0 0.0
        %537 = vmatprep.subr.mxu0 0.0
        %538 = vmatpush1.msra.mxu0 0.0
        %539 = vmatprep.subr.mxu0 0.0
        %540 = vmatpush1.msra.mxu0 0.0
        %541 = vmatprep.subr.mxu0 0.0
        %542 = vmatpush1.msra.mxu0 0.0
        %543 = vmatprep.subr.mxu0 0.0
        %544 = vmatpush1.msra.mxu0 0.0
        %545 = vmatprep.subr.mxu0 0.0
        %546 = vmatpush1.msra.mxu0 0.0
        %547 = vmatprep.subr.mxu0 0.0
        %548 = vmatpush1.msra.mxu0 0.0
        %549 = vmatprep.subr.mxu0 0.0
        %550 = vmatpush1.msra.mxu0 0.0
        %551 = vmatprep.mubr.f32.mxu0 0.0
        %552 = vmatmul.mubr.f32.gmra.mrb[0].mxu0 %v410
        %v553 = vpop.f32.mrb[0].mxu0
        %v554 = vadd.f32 0.0, %v553
        %v555 = vpop.f32.mrb[0].mxu0
        %556 = vdwg.mxu0
        %v557 = vadd.f32 %v484, %v554
        %558 = vst.msk [vmem:[#allocation4] sm:$0xff] %vm397, %v557
        // Predicated region
        $region37: #{tpu_custom_call.1} parent=27 // pred_check
          %p559 = pneg %p193
        $region38: #{tpu_custom_call.1} parent=27 // pred_check_branch
          %561 = sbr.rel (%p559) target = $region40
        $region39: #{tpu_custom_call.1} parent=27 // pred_region
          %v562 = vld [vmem:[#allocation2] sm:$0xff]
          %v563 = vld [vmem:[#allocation2 + $0x8] sm:$0xff]
          %v564 = vld [vmem:[#allocation2 + $0x10] sm:$0xff]
          %v565 = vld [vmem:[#allocation2 + $0x18] sm:$0xff]
          %v566 = vld [vmem:[#allocation2 + $0x20] sm:$0xff]
          %v567 = vld [vmem:[#allocation2 + $0x28] sm:$0xff]
          %v568 = vld [vmem:[#allocation2 + $0x30] sm:$0xff]
          %v569 = vld [vmem:[#allocation2 + $0x38] sm:$0xff]
          %v570 = vlaneseq
          %v571 = vshrl.u32 %v570, 7
          %v572 = vadd.s32 %v571, 8
          %v573 = vadd.s32 %v571, 16
          %v574 = vadd.s32 %v571, 24
          %v575 = vadd.s32 %v571, 32
          %v576 = vadd.s32 %v571, 40
          %v577 = vadd.s32 %v571, 48
          %v578 = vadd.s32 %v571, 56
          %v579 = vlaneseq
          %v580 = vand.u32 %v579, 127
          %vm581 = vcmp.eq.s32.totalorder %v571, %v580
          %vm582 = vcmp.eq.s32.totalorder %v572, %v580
          %vm583 = vcmp.eq.s32.totalorder %v573, %v580
          %vm584 = vcmp.eq.s32.totalorder %v574, %v580
          %vm585 = vcmp.eq.s32.totalorder %v575, %v580
          %vm586 = vcmp.eq.s32.totalorder %v576, %v580
          %vm587 = vcmp.eq.s32.totalorder %v577, %v580
          %vm588 = vcmp.eq.s32.totalorder %v578, %v580
          %v589 = vsel %vm581, %v562, 0.0
          %v590 = vsel %vm582, %v563, 0.0
          %v591 = vsel %vm583, %v564, 0.0
          %v592 = vsel %vm584, %v565, 0.0
          %v593 = vsel %vm585, %v566, 0.0
          %v594 = vsel %vm586, %v567, 0.0
          %v595 = vsel %vm587, %v568, 0.0
          %v596 = vsel %vm588, %v569, 0.0
          %v597 = vsel %vm397, %v589, 0.0
          %v598 = vsel %vm397, %v590, 0.0
          %v599 = vadd.f32 %v597, %v598
          %v600 = vsel %vm397, %v591, 0.0
          %v601 = vadd.f32 %v599, %v600
          %v602 = vsel %vm397, %v592, 0.0
          %v603 = vadd.f32 %v601, %v602
          %v604 = vsel %vm397, %v593, 0.0
          %v605 = vadd.f32 %v603, %v604
          %v606 = vsel %vm397, %v594, 0.0
          %v607 = vadd.f32 %v605, %v606
          %v608 = vsel %vm397, %v595, 0.0
          %v609 = vadd.f32 %v607, %v608
          %v610 = vsel %vm397, %v596, 0.0
          %v611 = vadd.f32 %v609, %v610
          %612 = vadd.xlane.f32.xlu0 %v611
          %v613 = vpop.xlane.xlu0 %612
          %v614 = vrot.slane %v613, 4
          %v615 = vadd.f32 %v613, %v614
          %v616 = vrot.slane %v615, 2
          %v617 = vadd.f32 %v615, %v616
          %v618 = vrot.slane %v617, 1
          %v619 = vadd.f32 %v617, %v618
          %s620 = vtos %v619
          %v621 = vrcp.pop 15.0
          %s622 = vtos %v621
          %s623 = smul.f32 %s620, %s622
          %v624 = vand.u32 2147483647, %v562
          %v625 = vand.u32 2147483647, %v563
          %v626 = vand.u32 2147483647, %v564
          %v627 = vand.u32 2147483647, %v565
          %v628 = vand.u32 2147483647, %v566
          %v629 = vand.u32 2147483647, %v567
          %v630 = vand.u32 2147483647, %v568
          %v631 = vand.u32 2147483647, %v569
          %v632 = vsel %vm397, %v624, 0.0
          %v633 = vsel %vm397, %v625, 0.0
          %v634 = vadd.f32 %v632, %v633
          %v635 = vsel %vm397, %v626, 0.0
          %v636 = vadd.f32 %v634, %v635
          %v637 = vsel %vm397, %v627, 0.0
          %v638 = vadd.f32 %v636, %v637
          %v639 = vsel %vm397, %v628, 0.0
          %v640 = vadd.f32 %v638, %v639
          %v641 = vsel %vm397, %v629, 0.0
          %v642 = vadd.f32 %v640, %v641
          %v643 = vsel %vm397, %v630, 0.0
          %v644 = vadd.f32 %v642, %v643
          %v645 = vsel %vm397, %v631, 0.0
          %v646 = vadd.f32 %v644, %v645
          %647 = vadd.xlane.f32.xlu0 %v646
          %v648 = vpop.xlane.xlu0 %647
          %v649 = vrot.slane %v648, 4
          %v650 = vadd.f32 %v648, %v649
          %v651 = vrot.slane %v650, 2
          %v652 = vadd.f32 %v650, %v651
          %v653 = vrot.slane %v652, 1
          %v654 = vadd.f32 %v652, %v653
          %s655 = vtos %v654
          %v656 = vrcp.pop 15.0
          %s657 = vtos %v656
          %s658 = smul.f32 %s655, %s657
          %s659 = ssub.f32 %s658, %s623
          %s660 = smul.f32 %s659, 0.5
          %v661 = vrcp.pop 4096.0
          %s662 = vtos %v661
          %s663 = smul.f32 %s660, %s662
          %v664 = vld [vmem:[#allocation4] sm:$0xff]
          %v665 = vsel %vm397, %v664, 0.0
          %666 = vadd.xlane.f32.xlu0 %v665
          %v667 = vpop.xlane.xlu0 %666
          %v668 = vrot.slane %v667, 4
          %v669 = vadd.f32 %v667, %v668
          %v670 = vrot.slane %v669, 2
          %v671 = vadd.f32 %v669, %v670
          %v672 = vrot.slane %v671, 1
          %v673 = vadd.f32 %v671, %v672
          %s674 = vtos %v673
          %v675 = vrcp.pop 8.0
          %s676 = vtos %v675
          %s677 = smul.f32 %s674, %s676
          %v678 = vld [vmem:[#allocation3] sm:$0xff]
          %v679 = vsel %vm397, %v678, 0.0
          %680 = vadd.xlane.f32.xlu0 %v679
          %v681 = vpop.xlane.xlu0 %680
          %v682 = vrot.slane %v681, 4
          %v683 = vadd.f32 %v681, %v682
          %v684 = vrot.slane %v683, 2
          %v685 = vadd.f32 %v683, %v684
          %v686 = vrot.slane %v685, 1
          %v687 = vadd.f32 %v685, %v686
          %s688 = vtos %v687
          %v689 = vrcp.pop 8.0
          %s690 = vtos %v689
          %s691 = smul.f32 %s688, %s690
          %v692 = vand.u32 2147483647, %v210
          %vm693 = vcmask 516096
          %v694 = vsel %vm693, %v692, 0.0
          %695 = vadd.xlane.f32.xlu0 %v694
          %v696 = vpop.xlane.xlu0 %695
          %v697 = vrot.slane %v696, 4
          %v698 = vadd.f32 %v696, %v697
          %v699 = vrot.slane %v698, 2
          %v700 = vadd.f32 %v698, %v699
          %v701 = vrot.slane %v700, 1
          %v702 = vadd.f32 %v700, %v701
          %s703 = vtos %v702
          %s704 = smul.f32 %s703, 0.0
          %s705 = ssub.f32 %s691, %s704
          %v706 = vstv %s677
          %v707 = vrcp.pop %v706
          %s708 = vtos %v707
          %s709 = smul.f32 1024.0, %s708
          %v710 = vrcp.pop 1024.0
          %s711 = vtos %v710
          %s712 = smul.f32 %s705, %s711
          %s713 = sadd.f32 %s663, %s709
          %s714 = sadd.f32 %s713, %s712
          %v715 = vstv %s714
          %716 = vst [vmem:[%s188] sm:$0xff] %v715
        $region40: #{tpu_custom_call.1} parent=27 // pred_fallthru
          _
        %s717 = sand.u32 %s93, 1
        %s718 = scalar_lea.sflag [#allocation7], %s717
        %s719 = sand.u32 %s93, 1
        %s720 = smul.addr %s719, 8
        %s721 = scalar_lea.vmem [#allocation8], %s720
        // Predicated region
        $region41: #{tpu_custom_call.1} parent=27 // pred_check
          %p722 = pneg %p103
        $region42: #{tpu_custom_call.1} parent=27 // pred_check_branch
          %724 = sbr.rel (%p722) target = $region44
        $region43: #{tpu_custom_call.1} parent=27 // pred_region
          %s726 = ssub.s32 128, 128
          %727 = vsyncadd %s718, %s726
          %s728 = smul.addr %s23, 128
          %s729 = scalar_lea.hbm %s2, %s728
          %s731 = sshll.u32 %s721, 4
          %s732 = int_to_ptr.vmem [resolvable:$true] %s731
          %734 = dma.vmem_to_hbm [thread:$0]  %s732, 128, %s729, %s718
        $region44: #{tpu_custom_call.1} parent=27 // pred_fallthru
          _
      $region28: #{tpu_custom_call.1} parent=5 // pred_fallthru
        _
      %p735 = scmp.le.s32.totalorder 2, %s14
      // Predicated region
      $region45: #{tpu_custom_call.1} parent=5 // pred_check
        %p736 = pneg %p735
      $region46: #{tpu_custom_call.1} parent=5 // pred_check_branch
        %738 = sbr.rel (%p736) target = $region48
      $region47: #{tpu_custom_call.1} parent=5 // pred_region
        %s739 = ssub.s32 %s14, 2
        // Predicated region
        $region49: #{tpu_custom_call.1} parent=47 // pred_check
          %p740 = pneg %p109
        $region50: #{tpu_custom_call.1} parent=47 // pred_check_branch
          %742 = sbr.rel (%p740) target = $region52
        $region51: #{tpu_custom_call.1} parent=47 // pred_region
          %s743 = sand.u32 %s94, 1
          %s744 = scalar_lea.sflag [#allocation7], %s743
          %s745 = sand.u32 %s94, 1
          %s746 = smul.addr %s745, 8
          %s747 = scalar_lea.vmem [#allocation8], %s746
          %748 = dma.done %s744, 128
        $region52: #{tpu_custom_call.1} parent=47 // pred_fallthru
          _
      $region48: #{tpu_custom_call.1} parent=5 // pred_fallthru
        _
    $region6: #{tpu_custom_call.1} parent=1 // loop_footer
      %s18 = sadd.s32 1, %s14
    $region7: #{tpu_custom_call.1} parent=1 // loop_footer_branch
      %13 = sbr.rel target = $region3
    $region8: #{tpu_custom_call.1} parent=1 // loop_exit
      _
    %749 = vsyncpa [#allocation6], 1
    %s750 = scalar_lea.sflag [#allocation6], 1
    %751 = vsyncpa %s750, 1
    %752 = vsyncpa [#allocation7], 1
    %s753 = scalar_lea.sflag [#allocation7], 1
    %754 = vsyncpa %s753, 1

</llo_original>
